<compile_context>
chip_gen: v5e
topology: v5e:2x2
jax: 0.10.0
libtpu: 0.0.40
codegen_flags: <defaults>
</compile_context>

<pallas_src>
import jax
import jax.numpy as jnp
from jax.experimental import pallas as pl
from jax.experimental.pallas import tpu as pltpu


def _fused_net_kernel(data_ref, w1_ref, b1_ref, w2_ref, b2_ref, w3_ref, b3_ref,
                      out_ref):
    x = data_ref[...]                                   # [TB, n_input] f32
    x4 = x[:, 0:4]                                      # data[:, 0:4]

    h1 = jnp.dot(x, w1_ref[...], preferred_element_type=jnp.float32) + b1_ref[...]
    h1 = jnp.maximum(h1, 0.0)
    h2 = jnp.dot(h1, w2_ref[...], preferred_element_type=jnp.float32) + b2_ref[...]
    h2 = jnp.maximum(h2, 0.0)
    out = jnp.dot(h2, w3_ref[...], preferred_element_type=jnp.float32) + b3_ref[...]
    # out = [d_out | s_out]; both halves are multiplied by data[:, 0:4]
    out_ref[...] = out * jnp.concatenate([x4, x4], axis=-1)


def _fuse_params(d_params, s_params):
    """Concatenate the two ControlNets into one block-diagonal matmul chain."""
    d_w1, d_b1, d_w2, d_b2, d_w3, d_b3 = d_params
    s_w1, s_b1, s_w2, s_b2, s_w3, s_b3 = s_params
    H = d_w1.shape[1]
    O = d_w3.shape[1]
    w1 = jnp.concatenate([d_w1, s_w1], axis=1)                      # [in, 2H]
    b1 = jnp.concatenate([d_b1, s_b1], axis=1)                      # [1, 2H]
    w2 = (jnp.zeros((2 * H, 2 * H), jnp.float32)
          .at[:H, :H].set(d_w2).at[H:, H:].set(s_w2))               # [2H, 2H]
    b2 = jnp.concatenate([d_b2, s_b2], axis=1)                      # [1, 2H]
    w3 = (jnp.zeros((2 * H, 2 * O), jnp.float32)
          .at[:H, :O].set(d_w3).at[H:, O:].set(s_w3))               # [2H, 2O]
    b3 = jnp.concatenate([d_b3, s_b3], axis=1)                      # [1, 2O]
    return w1, b1, w2, b2, w3, b3


def net_forward(data, params, tile_b=512):
    """params: dict with 's' and 'd' -> (w1, b1, w2, b2, w3, b3); weights are
    stored [in, out] (transposed vs PyTorch).  Returns (d_u, s_u)."""
    B, n_input = data.shape
    n_output = params["s"][5].shape[-1]
    # The module multiplies the [B, n_output] output by data[:, 0:4]:
    assert n_output == 4, "out * data[:, 0:4] requires n_output == 4"
    assert tile_b % 8 == 0

    w1, b1, w2, b2, w3, b3 = _fuse_params(params["d"], params["s"])
    n_out_cat = 2 * n_output

    # Batch tiling: single block for small B, otherwise tile_b-row tiles
    # (padded up so every grid step is full-size and f32-sublane aligned).
    if B <= tile_b:
        TB = B
        data_p = data
    else:
        TB = tile_b
        pad = (-B) % TB
        data_p = jnp.pad(data, ((0, pad), (0, 0))) if pad else data
    Bp = data_p.shape[0]
    grid = (Bp // TB,)

    def replicated(a):
        return pl.BlockSpec(a.shape, lambda i: (0, 0))

    out_cat = pl.pallas_call(
        _fused_net_kernel,
        out_shape=jax.ShapeDtypeStruct((Bp, n_out_cat), jnp.float32),
        grid=grid,
        in_specs=[
            pl.BlockSpec((TB, n_input), lambda i: (i, 0)),   # data (batch-tiled)
            replicated(w1), replicated(b1),
            replicated(w2), replicated(b2),
            replicated(w3), replicated(b3),
        ],
        out_specs=pl.BlockSpec((TB, n_out_cat), lambda i: (i, 0)),
        compiler_params=pltpu.CompilerParams(
            dimension_semantics=("parallel",)),
    )(data_p, w1, b1, w2, b2, w3, b3)

    out_cat = out_cat[:B]
    d_u = out_cat[:, :n_output]
    s_u = out_cat[:, n_output:]
    return d_u, s_u


def init_control_params(key, n_input, n_hidden, n_output):
    """Deterministic PyTorch-Linear-like init. Weights stored as [in, out]."""
    ks = jax.random.split(key, 6)

    def linear(kw, kb, fan_in, fan_out):
        bound = 1.0 / jnp.sqrt(float(fan_in))
        w = jax.random.uniform(kw, (fan_in, fan_out), jnp.float32, -bound, bound)
        b = jax.random.uniform(kb, (1, fan_out), jnp.float32, -bound, bound)
        return w, b

    w1, b1 = linear(ks[0], ks[1], n_input, n_hidden)
    w2, b2 = linear(ks[2], ks[3], n_hidden, n_hidden)
    w3, b3 = linear(ks[4], ks[5], n_hidden, n_output)
    return (w1, b1, w2, b2, w3, b3)


def reference_forward(data, params):
    """Pure-JAX reference (two separate ControlNets, like the torch module)."""
    def control(p):
        w1, b1, w2, b2, w3, b3 = p
        h1 = jnp.maximum(data @ w1 + b1, 0.0)
        h2 = jnp.maximum(h1 @ w2 + b2, 0.0)
        out = h2 @ w3 + b3
        return out * data[:, 0:4]
    return control(params["d"]), control(params["s"])


if __name__ == "__main__":
    # Small shapes implied by the module: bicycle-model state input, 4 controls.
    B, n_input, n_hidden, n_output = 8, 6, 32, 4

    key = jax.random.PRNGKey(0)
    k_data, k_s, k_d = jax.random.split(key, 3)

    data = jax.random.normal(k_data, (B, n_input), jnp.float32)
    params = {
        "s": init_control_params(k_s, n_input, n_hidden, n_output),
        "d": init_control_params(k_d, n_input, n_hidden, n_output),
    }

    d_u, s_u = net_forward(data, params)
    jax.block_until_ready((d_u, s_u))

    d_ref, s_ref = reference_forward(data, params)
    assert jnp.allclose(d_u, d_ref, atol=1e-5, rtol=1e-5)
    assert jnp.allclose(s_u, s_ref, atol=1e-5, rtol=1e-5)

    # TODO(synk): if Net is stepped in a rollout loop, move the time loop inside
    # the kernel (weights resident in VMEM) to amortize launch/DMA overhead.
    print("KERNEL_OK")
</pallas_src>

<mosaic_0001>
module attributes {stable_mosaic.version = 11 : i64} {
  func.func @_fused_net_kernel(%arg0: i32, %arg1: memref<8x6xf32, #tpu.memory_space<vmem>>, %arg2: memref<6x64xf32, #tpu.memory_space<vmem>>, %arg3: memref<1x64xf32, #tpu.memory_space<vmem>>, %arg4: memref<64x64xf32, #tpu.memory_space<vmem>>, %arg5: memref<1x64xf32, #tpu.memory_space<vmem>>, %arg6: memref<64x8xf32, #tpu.memory_space<vmem>>, %arg7: memref<1x8xf32, #tpu.memory_space<vmem>>, %arg8: memref<8x8xf32, #tpu.memory_space<vmem>>) attributes {dimension_semantics = [#tpu.dimension_semantics<parallel>], iteration_bounds = array<i64: 1>, scalar_prefetch = 0 : i64, scratch_operands = 0 : i64, tpu.core_type = #tpu.core_type<tc>, window_params = [{transform_indices = @transform_0, window_bounds = array<i64: 8, 6>}, {pipeline_mode = #tpu.pipeline_mode<synchronous>, transform_indices = @transform_1, window_bounds = array<i64: 6, 64>}, {pipeline_mode = #tpu.pipeline_mode<synchronous>, transform_indices = @transform_2, window_bounds = array<i64: 1, 64>}, {pipeline_mode = #tpu.pipeline_mode<synchronous>, transform_indices = @transform_3, window_bounds = array<i64: 64, 64>}, {pipeline_mode = #tpu.pipeline_mode<synchronous>, transform_indices = @transform_4, window_bounds = array<i64: 1, 64>}, {pipeline_mode = #tpu.pipeline_mode<synchronous>, transform_indices = @transform_5, window_bounds = array<i64: 64, 8>}, {pipeline_mode = #tpu.pipeline_mode<synchronous>, transform_indices = @transform_6, window_bounds = array<i64: 1, 8>}, {transform_indices = @transform_7, window_bounds = array<i64: 8, 8>}]} {
    %c0 = arith.constant 0 : index
    %c0_0 = arith.constant 0 : index
    %0 = vector.load %arg1[%c0, %c0_0] : memref<8x6xf32, #tpu.memory_space<vmem>>, vector<8x6xf32>
    %1 = vector.extract_strided_slice %0 {offsets = [0, 0], sizes = [8, 4], strides = [1, 1]} : vector<8x6xf32> to vector<8x4xf32>
    %c0_1 = arith.constant 0 : index
    %c0_2 = arith.constant 0 : index
    %2 = vector.load %arg2[%c0_1, %c0_2] : memref<6x64xf32, #tpu.memory_space<vmem>>, vector<6x64xf32>
    %cst = arith.constant dense<0.000000e+00> : vector<8x64xf32>
    %3 = tpu.matmul %0, %2, %cst {dimension_numbers = #tpu.dot_dimension_numbers<[1], [0], [0], [1], [0, 0, 1, 1], [], []>} : vector<8x6xf32>, vector<6x64xf32>, vector<8x64xf32> -> vector<8x64xf32>
    %c0_3 = arith.constant 0 : index
    %c0_4 = arith.constant 0 : index
    %4 = vector.load %arg3[%c0_3, %c0_4] : memref<1x64xf32, #tpu.memory_space<vmem>>, vector<1x64xf32>
    %5 = vector.broadcast %4 : vector<1x64xf32> to vector<8x64xf32>
    %6 = arith.addf %3, %5 : vector<8x64xf32>
    %cst_5 = arith.constant 0.000000e+00 : f32
    %7 = vector.broadcast %cst_5 : f32 to vector<8x64xf32>
    %8 = arith.maximumf %6, %7 : vector<8x64xf32>
    %c0_6 = arith.constant 0 : index
    %c0_7 = arith.constant 0 : index
    %9 = vector.load %arg4[%c0_6, %c0_7] : memref<64x64xf32, #tpu.memory_space<vmem>>, vector<64x64xf32>
    %cst_8 = arith.constant dense<0.000000e+00> : vector<8x64xf32>
    %10 = tpu.matmul %8, %9, %cst_8 {dimension_numbers = #tpu.dot_dimension_numbers<[1], [0], [0], [1], [0, 0, 1, 1], [], []>} : vector<8x64xf32>, vector<64x64xf32>, vector<8x64xf32> -> vector<8x64xf32>
    %c0_9 = arith.constant 0 : index
    %c0_10 = arith.constant 0 : index
    %11 = vector.load %arg5[%c0_9, %c0_10] : memref<1x64xf32, #tpu.memory_space<vmem>>, vector<1x64xf32>
    %12 = vector.broadcast %11 : vector<1x64xf32> to vector<8x64xf32>
    %13 = arith.addf %10, %12 : vector<8x64xf32>
    %cst_11 = arith.constant 0.000000e+00 : f32
    %14 = vector.broadcast %cst_11 : f32 to vector<8x64xf32>
    %15 = arith.maximumf %13, %14 : vector<8x64xf32>
    %c0_12 = arith.constant 0 : index
    %c0_13 = arith.constant 0 : index
    %16 = vector.load %arg6[%c0_12, %c0_13] : memref<64x8xf32, #tpu.memory_space<vmem>>, vector<64x8xf32>
    %cst_14 = arith.constant dense<0.000000e+00> : vector<8x8xf32>
    %17 = tpu.matmul %15, %16, %cst_14 {dimension_numbers = #tpu.dot_dimension_numbers<[1], [0], [0], [1], [0, 0, 1, 1], [], []>} : vector<8x64xf32>, vector<64x8xf32>, vector<8x8xf32> -> vector<8x8xf32>
    %c0_15 = arith.constant 0 : index
    %c0_16 = arith.constant 0 : index
    %18 = vector.load %arg7[%c0_15, %c0_16] : memref<1x8xf32, #tpu.memory_space<vmem>>, vector<1x8xf32>
    %19 = vector.broadcast %18 : vector<1x8xf32> to vector<8x8xf32>
    %20 = arith.addf %17, %19 : vector<8x8xf32>
    %21 = tpu.concatenate %1, %1 in 1 : vector<8x4xf32>, vector<8x4xf32> -> vector<8x8xf32>
    %22 = arith.mulf %20, %21 : vector<8x8xf32>
    %c0_17 = arith.constant 0 : index
    %c0_18 = arith.constant 0 : index
    %23 = vector.load %arg8[%c0_17, %c0_18] : memref<8x8xf32, #tpu.memory_space<vmem>>, vector<8x8xf32>
    tpu.vector_store %arg8[%c0_17, %c0_18], %22 {strides = array<i32>} : memref<8x8xf32, #tpu.memory_space<vmem>>, vector<8x8xf32>,
    return
  }
  func.func @transform_0(%arg0: i32) -> (i32, i32) {
    %c0_i32 = arith.constant 0 : i32
    %c0_i32_0 = arith.constant 0 : i32
    return %arg0, %c0_i32 : i32, i32
  }
  func.func @transform_1(%arg0: i32) -> (i32, i32) {
    %c0_i32 = arith.constant 0 : i32
    %c0_i32_0 = arith.constant 0 : i32
    %c0_i32_1 = arith.constant 0 : i32
    return %c0_i32, %c0_i32_0 : i32, i32
  }
  func.func @transform_2(%arg0: i32) -> (i32, i32) {
    %c0_i32 = arith.constant 0 : i32
    %c0_i32_0 = arith.constant 0 : i32
    %c0_i32_1 = arith.constant 0 : i32
    return %c0_i32, %c0_i32_0 : i32, i32
  }
  func.func @transform_3(%arg0: i32) -> (i32, i32) {
    %c0_i32 = arith.constant 0 : i32
    %c0_i32_0 = arith.constant 0 : i32
    %c0_i32_1 = arith.constant 0 : i32
    return %c0_i32, %c0_i32_0 : i32, i32
  }
  func.func @transform_4(%arg0: i32) -> (i32, i32) {
    %c0_i32 = arith.constant 0 : i32
    %c0_i32_0 = arith.constant 0 : i32
    %c0_i32_1 = arith.constant 0 : i32
    return %c0_i32, %c0_i32_0 : i32, i32
  }
  func.func @transform_5(%arg0: i32) -> (i32, i32) {
    %c0_i32 = arith.constant 0 : i32
    %c0_i32_0 = arith.constant 0 : i32
    %c0_i32_1 = arith.constant 0 : i32
    return %c0_i32, %c0_i32_0 : i32, i32
  }
  func.func @transform_6(%arg0: i32) -> (i32, i32) {
    %c0_i32 = arith.constant 0 : i32
    %c0_i32_0 = arith.constant 0 : i32
    %c0_i32_1 = arith.constant 0 : i32
    return %c0_i32, %c0_i32_0 : i32, i32
  }
  func.func @transform_7(%arg0: i32) -> (i32, i32) {
    %c0_i32 = arith.constant 0 : i32
    %c0_i32_0 = arith.constant 0 : i32
    return %arg0, %c0_i32 : i32, i32
  }
}

</mosaic_0001>

<llo_original>
// kernel: tpu_custom_call.1
$region0: #{tpu_custom_call.1}
  #allocation0 [shape = 'u32[]', space=smem, size = 0x4, offset = 0x4, fixed_abs, tag = 'smem constant byte address 0x4 - core index']
  #allocation1 [shape = 'u32[72,128]{1,0:T(1,128)}', space=vmem, size = 0x9000, scoped, tag = 'internal scratch']
  %s0 = inlined_call_operand.vmem [shape: f32[8,6], index: 0, kind: input, shape index: {}]
  %s1 = inlined_call_operand.hbm [shape: f32[6,64], index: 1, kind: input, shape index: {}]
  %s2 = inlined_call_operand.vmem [shape: f32[1,64], index: 2, kind: input, shape index: {}]
  %s3 = inlined_call_operand.vmem [shape: f32[64,64], index: 3, kind: input, shape index: {}]
  %s4 = inlined_call_operand.vmem [shape: f32[1,64], index: 4, kind: input, shape index: {}]
  %s5 = inlined_call_operand.vmem [shape: f32[64,8], index: 5, kind: input, shape index: {}]
  %s6 = inlined_call_operand.vmem [shape: f32[1,8], index: 6, kind: input, shape index: {}]
  %s7 = inlined_call_operand.hbm [shape: f32[8,8], index: 7, kind: output, shape index: {}]
  %s8 = sld [smem:[#allocation0]]
  $region42: #{tpu_custom_call.1} parent=0
    _
  %s10 = ssub.s32 1, %s8
  %s11 = scalar_select 0, %s10, %s8
  $region1: #{tpu_custom_call.1} parent=0
    #allocation2 [shape = 'u8[4096]{0}', space=vmem, size = 0x1000, scoped, tag = 'input window, operand 1, single buffered']
    #allocation3 [shape = 's32[1]{0}', space=sflag, size = 0x4, scoped, tag = 'scoped memory for tpu_custom_call.1']
    #allocation4 [shape = 's32[1]{0}', space=sflag, size = 0x4, scoped, tag = 'scoped memory for tpu_custom_call.1']
    #allocation5 [shape = 'u8[4096]{0}', space=vmem, size = 0x1000, scoped, tag = 'output window, operand 0, single buffered']
    %12 = vsyncpa [#allocation3], 0
    %13 = vsyncpa [#allocation4], 0
    // Predicated region
    $region2: #{tpu_custom_call.1} parent=1 // pred_check
      _
    $region3: #{tpu_custom_call.1} parent=1 // pred_check_branch
      %15 = sbr.rel (0) target = $region5
    $region4: #{tpu_custom_call.1} parent=1 // pred_region
      _
    $region5: #{tpu_custom_call.1} parent=1 // pred_fallthru
      _
    // Predicated region
    $region6: #{tpu_custom_call.1} parent=1 // pred_check
      _
    $region7: #{tpu_custom_call.1} parent=1 // pred_check_branch
      %17 = sbr.rel (0) target = $region9
    $region8: #{tpu_custom_call.1} parent=1 // pred_region
      %19 = vsyncadd [#allocation3], 0
      %s21 = sshll.u32 %s1, 4
      %s22 = int_to_ptr.hbm [resolvable:$true] %s21
      %s23 = sshll.u32 [#allocation2], 4
      %s24 = int_to_ptr.vmem [resolvable:$true] %s23
      %26 = dma.hbm_to_vmem [thread:$0]  %s22, 128, %s24, [#allocation3]
    $region9: #{tpu_custom_call.1} parent=1 // pred_fallthru
      _
    // Predicated region
    $region10: #{tpu_custom_call.1} parent=1 // pred_check
      _
    $region11: #{tpu_custom_call.1} parent=1 // pred_check_branch
      %28 = sbr.rel (0) target = $region13
    $region12: #{tpu_custom_call.1} parent=1 // pred_region
      _
    $region13: #{tpu_custom_call.1} parent=1 // pred_fallthru
      _
    // Predicated region
    $region14: #{tpu_custom_call.1} parent=1 // pred_check
      _
    $region15: #{tpu_custom_call.1} parent=1 // pred_check_branch
      %30 = sbr.rel (0) target = $region17
    $region16: #{tpu_custom_call.1} parent=1 // pred_region
      _
    $region17: #{tpu_custom_call.1} parent=1 // pred_fallthru
      _
    // Predicated region
    $region18: #{tpu_custom_call.1} parent=1 // pred_check
      _
    $region19: #{tpu_custom_call.1} parent=1 // pred_check_branch
      %32 = sbr.rel (0) target = $region21
    $region20: #{tpu_custom_call.1} parent=1 // pred_region
      _
    $region21: #{tpu_custom_call.1} parent=1 // pred_fallthru
      _
    // Predicated region
    $region22: #{tpu_custom_call.1} parent=1 // pred_check
      _
    $region23: #{tpu_custom_call.1} parent=1 // pred_check_branch
      %34 = sbr.rel (0) target = $region25
    $region24: #{tpu_custom_call.1} parent=1 // pred_region
      _
    $region25: #{tpu_custom_call.1} parent=1 // pred_fallthru
      _
    // Predicated region
    $region26: #{tpu_custom_call.1} parent=1 // pred_check
      _
    $region27: #{tpu_custom_call.1} parent=1 // pred_check_branch
      %36 = sbr.rel (0) target = $region29
    $region28: #{tpu_custom_call.1} parent=1 // pred_region
      _
    $region29: #{tpu_custom_call.1} parent=1 // pred_fallthru
      _
    // Predicated region
    $region30: #{tpu_custom_call.1} parent=1 // pred_check
      _
    $region31: #{tpu_custom_call.1} parent=1 // pred_check_branch
      %38 = sbr.rel (0) target = $region33
    $region32: #{tpu_custom_call.1} parent=1 // pred_region
      %40 = dma.done [#allocation3], 128
    $region33: #{tpu_custom_call.1} parent=1 // pred_fallthru
      _
    %v41 = vld [vmem:[%s0] sm:$0xff]
    %v42 = vld [vmem:[#allocation2] sm:$0x3f]
    %v43 = vld [vmem:[%s2] sm:$0x1]
    %v45 = vperm.slane %v43, 0
    %vm47 = vcmask 48128
    %v49 = vsel %vm47, %v41, 0
    %vm51 = vcmask 1045504
    %v53 = vsel %vm51, %v42, 0
    %55 = vmatpush.msra.mxu0 0.0
    %56 = vmatpush.msra.mxu0 0.0
    %57 = vmatpush.msra.mxu0 0.0
    %58 = vmatpush.msra.mxu0 0.0
    %59 = vmatpush.msra.mxu0 0.0
    %60 = vmatpush.msra.mxu0 0.0
    %61 = vmatpush.msra.mxu0 0.0
    %62 = vmatpush.msra.mxu0 0.0
    %63 = vmatpush.msra.mxu0 0.0
    %64 = vmatpush.msra.mxu0 0.0
    %65 = vmatpush.msra.mxu0 0.0
    %66 = vmatpush.msra.mxu0 0.0
    %67 = vmatpush.msra.mxu0 0.0
    %68 = vmatpush.msra.mxu0 0.0
    %69 = vmatpush.msra.mxu0 0.0
    %70 = vmatpush.msra.mxu0 %v53
    %71 = vmatmul.f32.gmra.mxu0 %v49
    %v72 = vpop.f32.mrf.mxu0
    %v73 = vadd.f32 %v45, %v72
    %74 = vdwg.mxu0
    %v75 = vmax.f32 %v73, 0.0
    %v76 = vld [vmem:[%s3] sm:$0xff]
    %v77 = vld [vmem:[%s3 + $0x8] sm:$0xff]
    %v78 = vld [vmem:[%s3 + $0x10] sm:$0xff]
    %v79 = vld [vmem:[%s3 + $0x18] sm:$0xff]
    %v80 = vld [vmem:[%s3 + $0x20] sm:$0xff]
    %v81 = vld [vmem:[%s3 + $0x28] sm:$0xff]
    %v82 = vld [vmem:[%s3 + $0x30] sm:$0xff]
    %v83 = vld [vmem:[%s3 + $0x38] sm:$0xff]
    %v84 = vld [vmem:[%s4] sm:$0x1]
    %v86 = vperm.slane %v84, 0
    %vm88 = vcmask 523264
    %v90 = vsel %vm88, %v75, 0
    %92 = vmatpush.msra.mxu0 0.0
    %93 = vmatpush.msra.mxu0 0.0
    %94 = vmatpush.msra.mxu0 0.0
    %95 = vmatpush.msra.mxu0 0.0
    %96 = vmatpush.msra.mxu0 0.0
    %97 = vmatpush.msra.mxu0 0.0
    %98 = vmatpush.msra.mxu0 0.0
    %99 = vmatpush.msra.mxu0 0.0
    %100 = vmatpush.msra.mxu0 %v83
    %101 = vmatpush.msra.mxu0 %v82
    %102 = vmatpush.msra.mxu0 %v81
    %103 = vmatpush.msra.mxu0 %v80
    %104 = vmatpush.msra.mxu0 %v79
    %105 = vmatpush.msra.mxu0 %v78
    %106 = vmatpush.msra.mxu0 %v77
    %107 = vmatpush.msra.mxu0 %v76
    %108 = vmatmul.f32.gmra.mxu0 %v90
    %v109 = vpop.f32.mrf.mxu0
    %v110 = vadd.f32 %v86, %v109
    %111 = vdwg.mxu0
    %v112 = vmax.f32 %v110, 0.0
    %v113 = vld [vmem:[%s5] sm:$0xff]
    %v114 = vld [vmem:[%s5 + $0x8] sm:$0xff]
    %v115 = vld [vmem:[%s5 + $0x10] sm:$0xff]
    %v116 = vld [vmem:[%s5 + $0x18] sm:$0xff]
    %v117 = vld [vmem:[%s5 + $0x20] sm:$0xff]
    %v118 = vld [vmem:[%s5 + $0x28] sm:$0xff]
    %v119 = vld [vmem:[%s5 + $0x30] sm:$0xff]
    %v120 = vld [vmem:[%s5 + $0x38] sm:$0xff]
    %v121 = vld [vmem:[%s6] sm:$0x1]
    %v123 = vperm.slane %v121, 0
    %v126 = vsel %vm88, %v112, 0
    %128 = vmatpush.msra.mxu0 0.0
    %129 = vmatpush.msra.mxu0 0.0
    %130 = vmatpush.msra.mxu0 0.0
    %131 = vmatpush.msra.mxu0 0.0
    %132 = vmatpush.msra.mxu0 0.0
    %133 = vmatpush.msra.mxu0 0.0
    %134 = vmatpush.msra.mxu0 0.0
    %135 = vmatpush.msra.mxu0 0.0
    %136 = vmatpush.msra.mxu0 %v120
    %137 = vmatpush.msra.mxu0 %v119
    %138 = vmatpush.msra.mxu0 %v118
    %139 = vmatpush.msra.mxu0 %v117
    %140 = vmatpush.msra.mxu0 %v116
    %141 = vmatpush.msra.mxu0 %v115
    %142 = vmatpush.msra.mxu0 %v114
    %143 = vmatpush.msra.mxu0 %v113
    %144 = vmatmul.f32.gmra.mxu0 %v126
    %v145 = vpop.f32.mrf.mxu0
    %v146 = vadd.f32 %v123, %v145
    %147 = vdwg.mxu0
    %148 = vrot.lane.b32.xlu0 %v41, 4
    %v149 = vpop.permute.xlu0 %148
    %vm151 = vcmask 31744
    %v152 = vsel %vm151, %v41, %v149
    %v153 = vmul.f32 %v146, %v152
    %vm154 = vcmask 64512
    %155 = vst.msk [vmem:[#allocation5] sm:$0xff] %vm154, %v153
    // Predicated region
    $region34: #{tpu_custom_call.1} parent=1 // pred_check
      _
    $region35: #{tpu_custom_call.1} parent=1 // pred_check_branch
      %157 = sbr.rel (0) target = $region37
    $region36: #{tpu_custom_call.1} parent=1 // pred_region
      %159 = vsyncadd [#allocation4], 0
      %s161 = sshll.u32 [#allocation5], 4
      %s162 = int_to_ptr.vmem [resolvable:$true] %s161
      %s163 = sshll.u32 %s7, 4
      %s164 = int_to_ptr.hbm [resolvable:$true] %s163
      %166 = dma.vmem_to_hbm [thread:$0]  %s162, 128, %s164, [#allocation4]
    $region37: #{tpu_custom_call.1} parent=1 // pred_fallthru
      _
    // Predicated region
    $region38: #{tpu_custom_call.1} parent=1 // pred_check
      _
    $region39: #{tpu_custom_call.1} parent=1 // pred_check_branch
      %168 = sbr.rel (0) target = $region41
    $region40: #{tpu_custom_call.1} parent=1 // pred_region
      %170 = dma.done [#allocation4], 128
    $region41: #{tpu_custom_call.1} parent=1 // pred_fallthru
      _
    %171 = vsyncpa [#allocation3], 1
    %172 = vsyncpa [#allocation4], 1

</llo_original>
